<compile_context>
chip_gen: v7x
topology: tpu7x:2x2x1
jax: 0.10.0
libtpu: 0.0.40
codegen_flags: <defaults>
</compile_context>

<pallas_src>
import functools

import jax
import jax.numpy as jnp
from jax.experimental import pallas as pl
from jax.experimental.pallas import tpu as pltpu

EPS = 1e-5


# ----------------- Pass 1: per-image BN statistics of the 1x1 conv -----------------

def make_stats_kernel(h, w):
    hw = h * w

    def kernel(wt_ref, x_ref, stats_ref):
        # wt_ref:    [Cout, Cin]  (resident: constant index_map)
        # x_ref:     [Cin, H*W]   this image (NCHW, spatial flattened on lanes)
        # stats_ref: [Cout, 2]    col 0 = sum(y), col 1 = sum((y - mean_img)^2)
        y = jnp.dot(wt_ref[...], x_ref[...], preferred_element_type=jnp.float32)
        s = jnp.sum(y, axis=1, keepdims=True)                  # [Cout, 1]
        d = y - s * jnp.float32(1.0 / hw)                      # centered per image
        m2 = jnp.sum(d * d, axis=1, keepdims=True)             # [Cout, 1]
        stats_ref[:, 0:1] = s                                  # direct sub-slice stores
        stats_ref[:, 1:2] = m2

    return kernel


# --------- Pass 2: recompute 1x1 conv, fuse BN + ReLU + separable 3x3 pool ---------

def make_fused_kernel(avg_or_max, h, w):
    hw = h * w
    is_avg = avg_or_max == 'avg'

    def combine(a, b):
        return a + b if is_avg else jnp.maximum(a, b)

    def kernel(bn_ref, wt_ref, x_ref, o_ref):
        # bn_ref: [Cout, 2]   col 0 = mean, col 1 = rsqrt(var + eps)   (resident)
        # wt_ref: [Cout, Cin] (resident)
        # x_ref:  [Cin, H*W]  this image
        # o_ref:  [Cout, H*W]
        y = jnp.dot(wt_ref[...], x_ref[...], preferred_element_type=jnp.float32)
        mean = bn_ref[:, 0:1]
        rstd = bn_ref[:, 1:2]
        # BatchNorm (batch stats, gamma=1, beta=0) + ReLU, all f32.
        z = jnp.maximum((y - mean) * rstd, jnp.float32(0.0))

        # 3x3 stride-1 pad-1 pool, separable: vertical 3-tap, then horizontal
        # 3-tap.  Spatial is flattened on lanes (p = r*w + c), so every shifted
        # tap is a pltpu.roll on the lane axis (XLU slot) plus an iota mask.
        # Out-of-image taps are replaced with 0, which is exact for both pools
        # because z >= 0 after ReLU: AvgPool2d(count_include_pad=True) pads
        # with real zeros, and for MaxPool a 0 never beats the always-valid
        # center tap.  (This invariant relies on the ReLU staying in place.)
        cout = z.shape[0]
        pos = jax.lax.broadcasted_iota(jnp.int32, (cout, hw), 1)
        col = pos % w
        zero = jnp.float32(0.0)

        # vertical taps: rows r-1 and r+1  (roll(x, s)[p] == x[(p - s) mod hw])
        up = jnp.where(pos >= w, pltpu.roll(z, shift=w, axis=1), zero)
        dn = jnp.where(pos < w * (h - 1), pltpu.roll(z, shift=hw - w, axis=1), zero)
        v = combine(combine(up, z), dn)

        # horizontal taps: columns c-1 and c+1
        lf = jnp.where(col >= 1, pltpu.roll(v, shift=1, axis=1), zero)
        rt = jnp.where(col <= w - 2, pltpu.roll(v, shift=hw - 1, axis=1), zero)
        r = combine(combine(lf, v), rt)
        if is_avg:
            r = r * jnp.float32(1.0 / 9.0)                     # /= kernel_size**2
        o_ref[...] = r

    return kernel


# --------------------------------- wrapper ------------------------------------

def _vmem_limit_bytes():
    # 48 MiB fits v7x's 64 MiB/TC VMEM; use a larger budget on 128-MiB parts.
    limit = 48 * 1024 * 1024
    try:
        if pltpu.get_tpu_info().vmem_capacity_bytes >= 128 * 1024 * 1024:
            limit = 96 * 1024 * 1024
    except Exception:
        pass
    return limit


def pool_branch_forward(x_nchw, w1, avg_or_max):
    """PoolBranch forward.  x: [N, Cin, H, W] f32, w1: [Cin, Cout] f32
    (PyTorch conv weight [Cout, Cin, 1, 1] viewed as [Cout, Cin], transposed).
    Returns [N, Cout, H, W] f32."""
    n, cin, h, w = x_nchw.shape
    cout = w1.shape[1]
    hw = h * w

    x_flat = x_nchw.reshape(n, cin, hw).astype(jnp.float32)   # free reshape (NCHW)
    wt = jnp.transpose(w1).astype(jnp.float32)                # [Cout, Cin], tiny

    cparams = pltpu.CompilerParams(
        dimension_semantics=("parallel",),        # shard images across TCs (v7x)
        vmem_limit_bytes=_vmem_limit_bytes())

    # ---- Pass 1: per-image (sum, M2) statistics of the pre-BN conv output ----
    stats = pl.pallas_call(
        make_stats_kernel(h, w),
        grid=(n,),
        in_specs=[
            pl.BlockSpec((cout, cin), lambda i: (0, 0)),
            pl.BlockSpec((None, cin, hw), lambda i: (i, 0, 0)),
        ],
        out_specs=pl.BlockSpec((None, cout, 2), lambda i: (i, 0, 0)),
        out_shape=jax.ShapeDtypeStruct((n, cout, 2), jnp.float32),
        compiler_params=cparams,
    )(wt, x_flat)

    # Chan k-way merge of per-image statistics -> batch mean / rsqrt(var + eps).
    m = n * hw
    sums = stats[:, :, 0]                                      # [N, Cout]
    m2s = stats[:, :, 1]                                       # [N, Cout]
    means = sums * jnp.float32(1.0 / hw)
    total_mean = jnp.sum(sums, axis=0) * jnp.float32(1.0 / m)
    total_m2 = jnp.sum(m2s, axis=0) + jnp.float32(hw) * jnp.sum(
        jnp.square(means - total_mean), axis=0)
    var = total_m2 * jnp.float32(1.0 / m)                      # biased, as in BN
    rstd = jax.lax.rsqrt(var + jnp.float32(EPS))
    bn = jnp.stack([total_mean, rstd], axis=1)                 # [Cout, 2]

    # ---- Pass 2: fused conv + BN + ReLU + 3x3 pool, one image per grid step ----
    # NOTE: for very large H*W per image on v7x (64 MiB VMEM/TC) or N == 1,
    # this grid could be split into H-strips with a 1-row halo to keep both
    # TensorCores fed; not needed at these block sizes.
    out = pl.pallas_call(
        make_fused_kernel(avg_or_max, h, w),
        grid=(n,),
        in_specs=[
            pl.BlockSpec((cout, 2), lambda i: (0, 0)),
            pl.BlockSpec((cout, cin), lambda i: (0, 0)),
            pl.BlockSpec((None, cin, hw), lambda i: (i, 0, 0)),
        ],
        out_specs=pl.BlockSpec((None, cout, hw), lambda i: (i, 0, 0)),
        out_shape=jax.ShapeDtypeStruct((n, cout, hw), jnp.float32),
        compiler_params=cparams,
    )(bn, wt, x_flat)

    return out.reshape(n, cout, h, w)                          # free reshape


pool_branch_avg = jax.jit(functools.partial(pool_branch_forward, avg_or_max='avg'))
pool_branch_max = jax.jit(functools.partial(pool_branch_forward, avg_or_max='max'))


# -------------------------- pure-JAX reference (f32) ---------------------------

def _reference_pool_branch(x_nchw, w1, avg_or_max):
    n, cin, h, w = x_nchw.shape
    y = jnp.einsum('cd,nchw->ndhw', w1.astype(jnp.float32), x_nchw.astype(jnp.float32))
    mean = jnp.mean(y, axis=(0, 2, 3), keepdims=True)
    var = jnp.mean(jnp.square(y - mean), axis=(0, 2, 3), keepdims=True)
    z = jnp.maximum((y - mean) * jax.lax.rsqrt(var + EPS), 0.0)
    pad_val = 0.0 if avg_or_max == 'avg' else -jnp.inf
    zp = jnp.pad(z, ((0, 0), (0, 0), (1, 1), (1, 1)), constant_values=pad_val)
    taps = [zp[:, :, dy:dy + h, dx:dx + w] for dy in range(3) for dx in range(3)]
    if avg_or_max == 'avg':
        out = sum(taps) / 9.0
    else:
        out = taps[0]
        for t in taps[1:]:
            out = jnp.maximum(out, t)
    return out


# ----------------------------------- main --------------------------------------

if __name__ == "__main__":
    key = jax.random.PRNGKey(0)
    k_x, k_w = jax.random.split(key)

    N, CIN, H, W = 2, 8, 16, 16
    COUT = 16

    x = jax.random.normal(k_x, (N, CIN, H, W), jnp.float32)
    w1 = jax.random.normal(k_w, (CIN, COUT), jnp.float32) / jnp.sqrt(jnp.float32(CIN))

    out_avg = pool_branch_avg(x, w1)
    out_max = pool_branch_max(x, w1)
    jax.block_until_ready((out_avg, out_max))

    assert out_avg.shape == (N, COUT, H, W)
    assert out_max.shape == (N, COUT, H, W)

    # Numerical sanity check against the f32 reference.
    ref_avg = _reference_pool_branch(x, w1, 'avg')
    ref_max = _reference_pool_branch(x, w1, 'max')
    assert bool(jnp.allclose(out_avg, ref_avg, atol=2e-2, rtol=2e-2)), "avg pool mismatch"
    assert bool(jnp.allclose(out_max, ref_max, atol=2e-2, rtol=2e-2)), "max pool mismatch"

    print("KERNEL_OK")
</pallas_src>

<mosaic_0001>
module attributes {stable_mosaic.version = 11 : i64} {
  func.func @kernel(%arg0: i32, %arg1: memref<16x8xf32, #tpu.memory_space<vmem>>, %arg2: memref<1x8x256xf32, #tpu.memory_space<vmem>>, %arg3: memref<1x16x2xf32, #tpu.memory_space<vmem>>) attributes {dimension_semantics = [#tpu.dimension_semantics<parallel>], iteration_bounds = array<i64: 2>, scalar_prefetch = 0 : i64, scratch_operands = 0 : i64, tpu.core_type = #tpu.core_type<tc>, window_params = [{pipeline_mode = #tpu.pipeline_mode<synchronous>, transform_indices = @transform_0, window_bounds = array<i64: 16, 8>}, {transform_indices = @transform_1, window_bounds = array<i64: 1, 8, 256>}, {transform_indices = @transform_2, window_bounds = array<i64: 1, 16, 2>}]} {
    %c0 = arith.constant 0 : index
    %c0_0 = arith.constant 0 : index
    %0 = vector.load %arg1[%c0, %c0_0] : memref<16x8xf32, #tpu.memory_space<vmem>>, vector<16x8xf32>
    %c0_1 = arith.constant 0 : index
    %c0_2 = arith.constant 0 : index
    %c0_3 = arith.constant 0 : index
    %1 = vector.load %arg2[%c0_1, %c0_2, %c0_3] : memref<1x8x256xf32, #tpu.memory_space<vmem>>, vector<1x8x256xf32>
    %2 = vector.shape_cast %1 : vector<1x8x256xf32> to vector<8x256xf32>
    %cst = arith.constant dense<0.000000e+00> : vector<16x256xf32>
    %3 = tpu.matmul %0, %2, %cst {dimension_numbers = #tpu.dot_dimension_numbers<[1], [0], [0], [1], [0, 0, 1, 1], [], []>} : vector<16x8xf32>, vector<8x256xf32>, vector<16x256xf32> -> vector<16x256xf32>
    %cst_4 = arith.constant dense<0.000000e+00> : vector<16xf32>
    %4 = vector.multi_reduction <add>, %3, %cst_4 [1] : vector<16x256xf32> to vector<16xf32>
    %5 = vector.shape_cast %4 : vector<16xf32> to vector<16x1xf32>
    %cst_5 = arith.constant 3.906250e-03 : f32
    %6 = vector.broadcast %cst_5 : f32 to vector<16x1xf32>
    %7 = arith.mulf %5, %6 : vector<16x1xf32>
    %8 = vector.broadcast %7 : vector<16x1xf32> to vector<16x256xf32>
    %9 = arith.subf %3, %8 : vector<16x256xf32>
    %10 = arith.mulf %9, %9 : vector<16x256xf32>
    %cst_6 = arith.constant dense<0.000000e+00> : vector<16xf32>
    %11 = vector.multi_reduction <add>, %10, %cst_6 [1] : vector<16x256xf32> to vector<16xf32>
    %12 = vector.shape_cast %11 : vector<16xf32> to vector<16x1xf32>
    %c0_7 = arith.constant 0 : index
    %c0_8 = arith.constant 0 : index
    %c0_9 = arith.constant 0 : index
    %13 = vector.load %arg3[%c0_7, %c0_8, %c0_9] : memref<1x16x2xf32, #tpu.memory_space<vmem>>, vector<1x16x1xf32>
    %14 = vector.shape_cast %13 : vector<1x16x1xf32> to vector<16x1xf32>
    %15 = vector.shape_cast %5 : vector<16x1xf32> to vector<1x16x1xf32>
    tpu.vector_store %arg3[%c0_7, %c0_8, %c0_9], %15 {strides = array<i32>} : memref<1x16x2xf32, #tpu.memory_space<vmem>>, vector<1x16x1xf32>,
    %c0_10 = arith.constant 0 : index
    %c0_11 = arith.constant 0 : index
    %c1 = arith.constant 1 : index
    %16 = vector.load %arg3[%c0_10, %c0_11, %c1] : memref<1x16x2xf32, #tpu.memory_space<vmem>>, vector<1x16x1xf32>
    %17 = vector.shape_cast %16 : vector<1x16x1xf32> to vector<16x1xf32>
    %18 = vector.shape_cast %12 : vector<16x1xf32> to vector<1x16x1xf32>
    tpu.vector_store %arg3[%c0_10, %c0_11, %c1], %18 {strides = array<i32>} : memref<1x16x2xf32, #tpu.memory_space<vmem>>, vector<1x16x1xf32>,
    return
  }
  func.func @transform_0(%arg0: i32) -> (i32, i32) {
    %c0_i32 = arith.constant 0 : i32
    %c0_i32_0 = arith.constant 0 : i32
    %c0_i32_1 = arith.constant 0 : i32
    return %c0_i32, %c0_i32_0 : i32, i32
  }
  func.func @transform_1(%arg0: i32) -> (i32, i32, i32) {
    %c0_i32 = arith.constant 0 : i32
    %c0_i32_0 = arith.constant 0 : i32
    %c0_i32_1 = arith.constant 0 : i32
    return %arg0, %c0_i32, %c0_i32_0 : i32, i32, i32
  }
  func.func @transform_2(%arg0: i32) -> (i32, i32, i32) {
    %c0_i32 = arith.constant 0 : i32
    %c0_i32_0 = arith.constant 0 : i32
    %c0_i32_1 = arith.constant 0 : i32
    return %arg0, %c0_i32, %c0_i32_0 : i32, i32, i32
  }
}

module attributes {stable_mosaic.version = 11 : i64} {
  func.func @kernel(%arg0: i32, %arg1: memref<16x2xf32, #tpu.memory_space<vmem>>, %arg2: memref<16x8xf32, #tpu.memory_space<vmem>>, %arg3: memref<1x8x256xf32, #tpu.memory_space<vmem>>, %arg4: memref<1x16x256xf32, #tpu.memory_space<vmem>>) attributes {dimension_semantics = [#tpu.dimension_semantics<parallel>], iteration_bounds = array<i64: 2>, scalar_prefetch = 0 : i64, scratch_operands = 0 : i64, tpu.core_type = #tpu.core_type<tc>, window_params = [{pipeline_mode = #tpu.pipeline_mode<synchronous>, transform_indices = @transform_0, window_bounds = array<i64: 16, 2>}, {pipeline_mode = #tpu.pipeline_mode<synchronous>, transform_indices = @transform_1, window_bounds = array<i64: 16, 8>}, {transform_indices = @transform_2, window_bounds = array<i64: 1, 8, 256>}, {transform_indices = @transform_3, window_bounds = array<i64: 1, 16, 256>}]} {
    %c0 = arith.constant 0 : index
    %c0_0 = arith.constant 0 : index
    %0 = vector.load %arg2[%c0, %c0_0] : memref<16x8xf32, #tpu.memory_space<vmem>>, vector<16x8xf32>
    %c0_1 = arith.constant 0 : index
    %c0_2 = arith.constant 0 : index
    %c0_3 = arith.constant 0 : index
    %1 = vector.load %arg3[%c0_1, %c0_2, %c0_3] : memref<1x8x256xf32, #tpu.memory_space<vmem>>, vector<1x8x256xf32>
    %2 = vector.shape_cast %1 : vector<1x8x256xf32> to vector<8x256xf32>
    %cst = arith.constant dense<0.000000e+00> : vector<16x256xf32>
    %3 = tpu.matmul %0, %2, %cst {dimension_numbers = #tpu.dot_dimension_numbers<[1], [0], [0], [1], [0, 0, 1, 1], [], []>} : vector<16x8xf32>, vector<8x256xf32>, vector<16x256xf32> -> vector<16x256xf32>
    %c0_4 = arith.constant 0 : index
    %c0_5 = arith.constant 0 : index
    %4 = vector.load %arg1[%c0_4, %c0_5] : memref<16x2xf32, #tpu.memory_space<vmem>>, vector<16x1xf32>
    %c0_6 = arith.constant 0 : index
    %c1 = arith.constant 1 : index
    %5 = vector.load %arg1[%c0_6, %c1] : memref<16x2xf32, #tpu.memory_space<vmem>>, vector<16x1xf32>
    %6 = vector.broadcast %4 : vector<16x1xf32> to vector<16x256xf32>
    %7 = arith.subf %3, %6 : vector<16x256xf32>
    %8 = vector.broadcast %5 : vector<16x1xf32> to vector<16x256xf32>
    %9 = arith.mulf %7, %8 : vector<16x256xf32>
    %cst_7 = arith.constant 0.000000e+00 : f32
    %10 = vector.broadcast %cst_7 : f32 to vector<16x256xf32>
    %11 = arith.maximumf %9, %10 : vector<16x256xf32>
    %12 = tpu.iota {dimensions = array<i32: 1>} : vector<16x256xi32>
    %c16_i32 = arith.constant 16 : i32
    %c0_i32 = arith.constant 0 : i32
    %13 = arith.cmpi eq, %c16_i32, %c0_i32 : i32
    %c1_i32 = arith.constant 1 : i32
    %14 = arith.select %13, %c1_i32, %c16_i32 : i32
    %15 = vector.broadcast %14 : i32 to vector<16x256xi32>
    %16 = arith.remsi %12, %15 : vector<16x256xi32>
    %c0_i32_8 = arith.constant 0 : i32
    %17 = vector.broadcast %c0_i32_8 : i32 to vector<16x256xi32>
    %18 = arith.cmpi ne, %16, %17 : vector<16x256xi32>
    %c0_i32_9 = arith.constant 0 : i32
    %19 = vector.broadcast %c0_i32_9 : i32 to vector<16x256xi32>
    %20 = arith.cmpi slt, %16, %19 : vector<16x256xi32>
    %c0_i32_10 = arith.constant 0 : i32
    %21 = arith.cmpi slt, %14, %c0_i32_10 : i32
    %22 = vector.broadcast %21 : i1 to vector<16x256xi1>
    %23 = vector.broadcast %22 : vector<16x256xi1> to vector<16x256xi1>
    %24 = arith.xori %20, %23 : vector<16x256xi1>
    %25 = arith.andi %24, %18 : vector<16x256xi1>
    %26 = vector.broadcast %14 : i32 to vector<16x256xi32>
    %27 = arith.addi %16, %26 : vector<16x256xi32>
    %28 = arith.select %25, %27, %16 : vector<16x256xi1>, vector<16x256xi32>
    %c16_i32_11 = arith.constant 16 : i32
    %29 = vector.broadcast %c16_i32_11 : i32 to vector<16x256xi32>
    %30 = arith.cmpi sge, %12, %29 : vector<16x256xi32>
    %c16_i32_12 = arith.constant 16 : i32
    %31 = tpu.dynamic_rotate %11 by %c16_i32_12 dim 1 : vector<16x256xf32>, i32 -> vector<16x256xf32>
    %cst_13 = arith.constant 0.000000e+00 : f32
    %32 = vector.broadcast %cst_13 : f32 to vector<16x256xf32>
    %33 = arith.select %30, %31, %32 : vector<16x256xi1>, vector<16x256xf32>
    %c240_i32 = arith.constant 240 : i32
    %34 = vector.broadcast %c240_i32 : i32 to vector<16x256xi32>
    %35 = arith.cmpi slt, %12, %34 : vector<16x256xi32>
    %c240_i32_14 = arith.constant 240 : i32
    %36 = tpu.dynamic_rotate %11 by %c240_i32_14 dim 1 : vector<16x256xf32>, i32 -> vector<16x256xf32>
    %cst_15 = arith.constant 0.000000e+00 : f32
    %37 = vector.broadcast %cst_15 : f32 to vector<16x256xf32>
    %38 = arith.select %35, %36, %37 : vector<16x256xi1>, vector<16x256xf32>
    %39 = arith.addf %33, %11 : vector<16x256xf32>
    %40 = arith.addf %39, %38 : vector<16x256xf32>
    %c1_i32_16 = arith.constant 1 : i32
    %41 = vector.broadcast %c1_i32_16 : i32 to vector<16x256xi32>
    %42 = arith.cmpi sge, %28, %41 : vector<16x256xi32>
    %c1_i32_17 = arith.constant 1 : i32
    %43 = tpu.dynamic_rotate %40 by %c1_i32_17 dim 1 : vector<16x256xf32>, i32 -> vector<16x256xf32>
    %cst_18 = arith.constant 0.000000e+00 : f32
    %44 = vector.broadcast %cst_18 : f32 to vector<16x256xf32>
    %45 = arith.select %42, %43, %44 : vector<16x256xi1>, vector<16x256xf32>
    %c14_i32 = arith.constant 14 : i32
    %46 = vector.broadcast %c14_i32 : i32 to vector<16x256xi32>
    %47 = arith.cmpi sle, %28, %46 : vector<16x256xi32>
    %c255_i32 = arith.constant 255 : i32
    %48 = tpu.dynamic_rotate %40 by %c255_i32 dim 1 : vector<16x256xf32>, i32 -> vector<16x256xf32>
    %cst_19 = arith.constant 0.000000e+00 : f32
    %49 = vector.broadcast %cst_19 : f32 to vector<16x256xf32>
    %50 = arith.select %47, %48, %49 : vector<16x256xi1>, vector<16x256xf32>
    %51 = arith.addf %45, %40 : vector<16x256xf32>
    %52 = arith.addf %51, %50 : vector<16x256xf32>
    %cst_20 = arith.constant 0.111111112 : f32
    %53 = vector.broadcast %cst_20 : f32 to vector<16x256xf32>
    %54 = arith.mulf %52, %53 : vector<16x256xf32>
    %c0_21 = arith.constant 0 : index
    %c0_22 = arith.constant 0 : index
    %c0_23 = arith.constant 0 : index
    %55 = vector.load %arg4[%c0_21, %c0_22, %c0_23] : memref<1x16x256xf32, #tpu.memory_space<vmem>>, vector<1x16x256xf32>
    %56 = vector.shape_cast %55 : vector<1x16x256xf32> to vector<16x256xf32>
    %57 = vector.shape_cast %54 : vector<16x256xf32> to vector<1x16x256xf32>
    tpu.vector_store %arg4[%c0_21, %c0_22, %c0_23], %57 {strides = array<i32>} : memref<1x16x256xf32, #tpu.memory_space<vmem>>, vector<1x16x256xf32>,
    return
  }
  func.func @transform_0(%arg0: i32) -> (i32, i32) {
    %c0_i32 = arith.constant 0 : i32
    %c0_i32_0 = arith.constant 0 : i32
    %c0_i32_1 = arith.constant 0 : i32
    return %c0_i32, %c0_i32_0 : i32, i32
  }
  func.func @transform_1(%arg0: i32) -> (i32, i32) {
    %c0_i32 = arith.constant 0 : i32
    %c0_i32_0 = arith.constant 0 : i32
    %c0_i32_1 = arith.constant 0 : i32
    return %c0_i32, %c0_i32_0 : i32, i32
  }
  func.func @transform_2(%arg0: i32) -> (i32, i32, i32) {
    %c0_i32 = arith.constant 0 : i32
    %c0_i32_0 = arith.constant 0 : i32
    %c0_i32_1 = arith.constant 0 : i32
    return %arg0, %c0_i32, %c0_i32_0 : i32, i32, i32
  }
  func.func @transform_3(%arg0: i32) -> (i32, i32, i32) {
    %c0_i32 = arith.constant 0 : i32
    %c0_i32_0 = arith.constant 0 : i32
    %c0_i32_1 = arith.constant 0 : i32
    return %arg0, %c0_i32, %c0_i32_0 : i32, i32, i32
  }
}

</mosaic_0001>

<llo_original>
// kernel: pool_branch_forward.2
$region0: #{pool_branch_forward.2}
  #allocation0 [shape = 'u32[]', space=smem, size = 0x4, offset = 0x4, fixed_abs, tag = 'smem constant byte address 0x4 - core index']
  #allocation1 [shape = 'u32[144,128]{1,0:T(1,128)}', space=vmem, size = 0x12000, scoped, tag = 'internal scratch']
  %s0 = inlined_call_operand.vmem [shape: f32[16,8], index: 0, kind: input, shape index: {}]
  %s1 = inlined_call_operand.vmem [shape: f32[2,8,256], index: 1, kind: input, shape index: {}]
  %s2 = inlined_call_operand.vmem [shape: f32[2,16,2], index: 2, kind: output, shape index: {}]
  %s3 = sld [smem:[#allocation0]]
  $region41: #{pool_branch_forward.2} parent=0
    _
  %s5 = ssub.s32 1, %s3
  %s6 = scalar_select 0, %s5, %s3
  loop: start=0, step=1, limit=4
  $region2: #{pool_branch_forward.2} parent=0 // loop_pre_header
    _
  $region3: #{pool_branch_forward.2} parent=0 // loop_header
    %s8 = sphi 0, %s12
    %p9 = scmp.ge.s32.totalorder %s8, 4
    %s16 = sphi 0, %s16
    %s18 = sphi 0, %s16
    %s19 = sphi 0, %s18
    %s33 = sphi 0, %s19
    %s39 = sphi 0, %s41
    %s42 = sphi 0, %s39
    %s43 = sphi 0, %s42
    %s59 = sphi 0, %s43
    %s65 = sphi 0, %s67
    %s68 = sphi 0, %s65
    %s69 = sphi 0, %s68
    %s85 = sphi 0, %s69
  $region4: #{pool_branch_forward.2} parent=0 // loop_header_branch
    %11 = sbr.rel (%p9) target = $region8
  $region5: #{pool_branch_forward.2} parent=0 // loop_body
    %s13 = ssub.s32 %s8, 1
    %s14 = ssub.s32 %s8, 2
    %s15 = sadd.s32 %s8, 1
    %s17 = sadd.s32 %s16, 1
    %p20 = scmp.eq.s32.totalorder %s8, 1
    %p21 = scmp.ne.s32.totalorder %s16, %s18
    %p22 = scmp.eq.s32.totalorder %s8, 0
    %p23 = por %p21, %p22
    %p24 = scmp.ne.s32.totalorder %s16, %s18
    %p25 = scmp.eq.s32.totalorder %s13, 1
    %p26 = por %p24, %p25
    %p27 = scmp.ne.s32.totalorder %s18, %s19
    %p28 = scmp.eq.s32.totalorder %s13, 0
    %p29 = por %p27, %p28
    %p30 = scmp.ne.s32.totalorder %s18, %s19
    %p31 = scmp.eq.s32.totalorder %s14, 1
    %p32 = por %p30, %p31
    %p34 = scmp.ne.s32.totalorder %s19, %s33
    %p35 = scmp.eq.s32.totalorder %s14, 0
    %p36 = por %p34, %p35
    %s37 = ssub.s32 %s8, %s15
    %p38 = scmp.eq.s32.totalorder %s37, 0
    %s40 = sadd.s32 %s39, 1
    %s41 = scalar_select %p38, %s39, %s40
    %p44 = pneg %p38
    %p45 = scmp.eq.s32.totalorder %s8, 1
    %p46 = por %p44, %p45
    %p47 = scmp.ne.s32.totalorder %s39, %s42
    %p48 = scmp.eq.s32.totalorder %s8, 0
    %p49 = por %p47, %p48
    %p50 = scmp.ne.s32.totalorder %s39, %s42
    %p51 = scmp.eq.s32.totalorder %s13, 1
    %p52 = por %p50, %p51
    %p53 = scmp.ne.s32.totalorder %s42, %s43
    %p54 = scmp.eq.s32.totalorder %s13, 0
    %p55 = por %p53, %p54
    %p56 = scmp.ne.s32.totalorder %s42, %s43
    %p57 = scmp.eq.s32.totalorder %s14, 1
    %p58 = por %p56, %p57
    %p60 = scmp.ne.s32.totalorder %s43, %s59
    %p61 = scmp.eq.s32.totalorder %s14, 0
    %p62 = por %p60, %p61
    %s63 = ssub.s32 %s8, %s15
    %p64 = scmp.eq.s32.totalorder %s63, 0
    %s66 = sadd.s32 %s65, 1
    %s67 = scalar_select %p64, %s65, %s66
    %p70 = pneg %p64
    %p71 = scmp.eq.s32.totalorder %s8, 1
    %p72 = por %p70, %p71
    %p73 = scmp.ne.s32.totalorder %s65, %s68
    %p74 = scmp.eq.s32.totalorder %s8, 0
    %p75 = por %p73, %p74
    %p76 = scmp.ne.s32.totalorder %s65, %s68
    %p77 = scmp.eq.s32.totalorder %s13, 1
    %p78 = por %p76, %p77
    %p79 = scmp.ne.s32.totalorder %s68, %s69
    %p80 = scmp.eq.s32.totalorder %s13, 0
    %p81 = por %p79, %p80
    %p82 = scmp.ne.s32.totalorder %s68, %s69
    %p83 = scmp.eq.s32.totalorder %s14, 1
    %p84 = por %p82, %p83
    %p86 = scmp.ne.s32.totalorder %s69, %s85
    %p87 = scmp.eq.s32.totalorder %s14, 0
    %p88 = por %p86, %p87
    %p89 = scmp.le.s32.totalorder 1, %s8
    %p90 = scmp.lt.s32.totalorder %s8, 3
    %p91 = pnand %p89, %p90
    %p92 = pneg %p91
    // Predicated region
    $region9: #{pool_branch_forward.2} parent=5 // pred_check
      _
    $region10: #{pool_branch_forward.2} parent=5 // pred_check_branch
      %94 = sbr.rel (%p91) target = $region12
    $region11: #{pool_branch_forward.2} parent=5 // pred_region
      %s95 = ssub.s32 %s8, 1
      // Predicated region
      $region13: #{pool_branch_forward.2} parent=11 // pred_check
        %p96 = pneg %p29
      $region14: #{pool_branch_forward.2} parent=11 // pred_check_branch
        %98 = sbr.rel (%p96) target = $region16
      $region15: #{pool_branch_forward.2} parent=11 // pred_region
        _
      $region16: #{pool_branch_forward.2} parent=11 // pred_fallthru
        _
    $region12: #{pool_branch_forward.2} parent=5 // pred_fallthru
      _
    %p99 = scmp.lt.s32.totalorder %s8, 2
    // Predicated region
    $region17: #{pool_branch_forward.2} parent=5 // pred_check
      %p100 = pneg %p99
    $region18: #{pool_branch_forward.2} parent=5 // pred_check_branch
      %102 = sbr.rel (%p100) target = $region20
    $region19: #{pool_branch_forward.2} parent=5 // pred_region
      // Predicated region
      $region21: #{pool_branch_forward.2} parent=19 // pred_check
        %p103 = pneg %p49
      $region22: #{pool_branch_forward.2} parent=19 // pred_check_branch
        %105 = sbr.rel (%p103) target = $region24
      $region23: #{pool_branch_forward.2} parent=19 // pred_region
        %p106 = scmp.lt.s32.totalorder %s8, 1
        %s107 = scalar_select %p106, %s8, 1
        %s108 = smul.addr %s107, 2
        %s109 = smul.addr %s108, 8
        %s110 = scalar_lea.vmem %s1, %s109
      $region24: #{pool_branch_forward.2} parent=19 // pred_fallthru
        _
    $region20: #{pool_branch_forward.2} parent=5 // pred_fallthru
      _
    %p111 = scmp.le.s32.totalorder 1, %s8
    %p112 = scmp.lt.s32.totalorder %s8, 3
    %p113 = pnand %p111, %p112
    %p114 = pneg %p113
    // Predicated region
    $region25: #{pool_branch_forward.2} parent=5 // pred_check
      _
    $region26: #{pool_branch_forward.2} parent=5 // pred_check_branch
      %116 = sbr.rel (%p113) target = $region28
    $region27: #{pool_branch_forward.2} parent=5 // pred_region
      %s117 = ssub.s32 %s8, 1
      %p118 = pneg %p29
      %p119 = pneg %p26
      %p120 = scmp.lt.s32.totalorder %s13, 1
      %s121 = scalar_select %p120, %s13, 1
      %s122 = smul.addr %s121, 2
      %s123 = smul.addr %s122, 8
      %s124 = scalar_lea.vmem %s1, %s123
      %p125 = pneg %p55
      %p126 = pneg %p52
      %p127 = pneg %p81
      %p128 = pneg %p78
      %p129 = scmp.lt.s32.totalorder %s13, 1
      %s130 = scalar_select %p129, %s13, 1
      %s131 = smul.addr %s130, 2
      %s132 = smul.addr %s131, 8
      %s133 = scalar_lea.vmem %s2, %s132
      %p134 = scmp.lt.s32.totalorder %s13, 1
      %s135 = scalar_select %p134, %s13, 1
      %s136 = smul.addr %s135, 2
      %s137 = smul.addr %s136, 8
      %s138 = scalar_lea.vmem %s1, %s137
      %p139 = scmp.lt.s32.totalorder %s13, 1
      %s140 = scalar_select %p139, %s13, 1
      %s141 = smul.addr %s140, 2
      %s142 = smul.addr %s141, 8
      %s143 = scalar_lea.vmem %s2, %s142
      %v144 = vld [vmem:[%s0] sm:$0xff]
      %v145 = vld [vmem:[%s0 + $0x8] sm:$0xff]
      %v146 = vld [vmem:[%s138] sm:$0xff]
      %v147 = vld [vmem:[%s138 + $0x8] sm:$0xff]
      %vm148 = vcmask 64512
      %v150 = vsel %vm148, %v144, 0
      %v153 = vsel %vm148, %v145, 0
      %155 = vmatprep.subr.mxu0 %v147
      %156 = vmatpush1.msra.mxu0 %v146
      %157 = vmatprep.subr.mxu0 0.0
      %158 = vmatpush1.msra.mxu0 0.0
      %159 = vmatprep.subr.mxu0 0.0
      %160 = vmatpush1.msra.mxu0 0.0
      %161 = vmatprep.subr.mxu0 0.0
      %162 = vmatpush1.msra.mxu0 0.0
      %163 = vmatprep.subr.mxu0 0.0
      %164 = vmatpush1.msra.mxu0 0.0
      %165 = vmatprep.subr.mxu0 0.0
      %166 = vmatpush1.msra.mxu0 0.0
      %167 = vmatprep.subr.mxu0 0.0
      %168 = vmatpush1.msra.mxu0 0.0
      %169 = vmatprep.subr.mxu0 0.0
      %170 = vmatpush1.msra.mxu0 0.0
      %171 = vmatprep.subr.mxu0 0.0
      %172 = vmatpush1.msra.mxu0 0.0
      %173 = vmatprep.subr.mxu0 0.0
      %174 = vmatpush1.msra.mxu0 0.0
      %175 = vmatprep.subr.mxu0 0.0
      %176 = vmatpush1.msra.mxu0 0.0
      %177 = vmatprep.subr.mxu0 0.0
      %178 = vmatpush1.msra.mxu0 0.0
      %179 = vmatprep.subr.mxu0 0.0
      %180 = vmatpush1.msra.mxu0 0.0
      %181 = vmatprep.subr.mxu0 0.0
      %182 = vmatpush1.msra.mxu0 0.0
      %183 = vmatprep.subr.mxu0 0.0
      %184 = vmatpush1.msra.mxu0 0.0
      %185 = vmatprep.subr.mxu0 0.0
      %186 = vmatpush1.msra.mxu0 0.0
      %187 = vmatprep.subr.mxu0 0.0
      %188 = vmatpush1.msra.mxu0 0.0
      %189 = vmatprep.subr.mxu0 0.0
      %190 = vmatpush1.msra.mxu0 0.0
      %191 = vmatprep.subr.mxu0 0.0
      %192 = vmatpush1.msra.mxu0 0.0
      %193 = vmatprep.subr.mxu0 0.0
      %194 = vmatpush1.msra.mxu0 0.0
      %195 = vmatprep.subr.mxu0 0.0
      %196 = vmatpush1.msra.mxu0 0.0
      %197 = vmatprep.subr.mxu0 0.0
      %198 = vmatpush1.msra.mxu0 0.0
      %199 = vmatprep.subr.mxu0 0.0
      %200 = vmatpush1.msra.mxu0 0.0
      %201 = vmatprep.subr.mxu0 0.0
      %202 = vmatpush1.msra.mxu0 0.0
      %203 = vmatprep.subr.mxu0 0.0
      %204 = vmatpush1.msra.mxu0 0.0
      %205 = vmatprep.subr.mxu0 0.0
      %206 = vmatpush1.msra.mxu0 0.0
      %207 = vmatprep.subr.mxu0 0.0
      %208 = vmatpush1.msra.mxu0 0.0
      %209 = vmatprep.subr.mxu0 0.0
      %210 = vmatpush1.msra.mxu0 0.0
      %211 = vmatprep.subr.mxu0 0.0
      %212 = vmatpush1.msra.mxu0 0.0
      %213 = vmatprep.subr.mxu0 0.0
      %214 = vmatpush1.msra.mxu0 0.0
      %215 = vmatprep.subr.mxu0 0.0
      %216 = vmatpush1.msra.mxu0 0.0
      %217 = vmatprep.subr.mxu0 0.0
      %218 = vmatpush1.msra.mxu0 0.0
      %219 = vmatprep.mubr.f32.mxu0 0.0
      %220 = vmatmul.mubr.f32.gmra.mrb[0].mxu0 %v150
      %v221 = vpop.f32.mrb[0].mxu0
      %v222 = vadd.f32 0.0, %v221
      %v223 = vpop.f32.mrb[0].mxu0
      %v224 = vadd.f32 0.0, %v223
      %225 = vmatprep.mubr.f32.mxu0 0.0
      %226 = vmatmul.mubr.f32.gmra.mrb[0].mxu0 %v153
      %v227 = vpop.f32.mrb[0].mxu0
      %v228 = vadd.f32 0.0, %v227
      %v229 = vpop.f32.mrb[0].mxu0
      %v230 = vadd.f32 0.0, %v229
      %231 = vdwg.mxu0
      %v232 = vadd.f32 %v222, %v224
      %233 = vadd.xlane.f32.xlu0 %v232
      %v234 = vpop.xlane.xlu0 %233
      %v235 = vadd.f32 %v228, %v230
      %236 = vadd.xlane.f32.xlu0 %v235
      %v237 = vpop.xlane.xlu0 %236
      %v238 = vmul.f32 %v234, 0.00390625
      %v239 = vmul.f32 %v237, 0.00390625
      %v240 = vsub.f32 %v222, %v238
      %v241 = vsub.f32 %v224, %v238
      %v242 = vsub.f32 %v228, %v239
      %v243 = vsub.f32 %v230, %v239
      %v244 = vmul.f32 %v240, %v240
      %v245 = vmul.f32 %v241, %v241
      %v246 = vmul.f32 %v242, %v242
      %v247 = vmul.f32 %v243, %v243
      %v248 = vadd.f32 %v244, %v245
      %249 = vadd.xlane.f32.xlu0 %v248
      %v250 = vpop.xlane.xlu0 %249
      %v251 = vadd.f32 %v246, %v247
      %252 = vadd.xlane.f32.xlu0 %v251
      %v253 = vpop.xlane.xlu0 %252
      %vm254 = vcmask 7168
      %255 = vst.msk [vmem:[%s143] sm:$0xff] %vm254, %v234
      %256 = vst.msk [vmem:[%s143 + $0x8] sm:$0xff] %vm254, %v237
      %vm257 = vcmask 15368
      %258 = vst.msk [vmem:[%s143] sm:$0xff] %vm257, %v250
      %259 = vst.msk [vmem:[%s143 + $0x8] sm:$0xff] %vm257, %v253
      %p260 = scmp.lt.s32.totalorder %s13, 1
      %s261 = scalar_select %p260, %s13, 1
      %s262 = smul.addr %s261, 2
      %s263 = smul.addr %s262, 8
      %s264 = scalar_lea.vmem %s2, %s263
      // Predicated region
      $region29: #{pool_branch_forward.2} parent=27 // pred_check
        %p265 = pneg %p78
      $region30: #{pool_branch_forward.2} parent=27 // pred_check_branch
        %267 = sbr.rel (%p265) target = $region32
      $region31: #{pool_branch_forward.2} parent=27 // pred_region
        _
      $region32: #{pool_branch_forward.2} parent=27 // pred_fallthru
        _
    $region28: #{pool_branch_forward.2} parent=5 // pred_fallthru
      _
    %p268 = scmp.le.s32.totalorder 2, %s8
    // Predicated region
    $region33: #{pool_branch_forward.2} parent=5 // pred_check
      %p269 = pneg %p268
    $region34: #{pool_branch_forward.2} parent=5 // pred_check_branch
      %271 = sbr.rel (%p269) target = $region36
    $region35: #{pool_branch_forward.2} parent=5 // pred_region
      %s272 = ssub.s32 %s8, 2
      // Predicated region
      $region37: #{pool_branch_forward.2} parent=35 // pred_check
        %p273 = pneg %p84
      $region38: #{pool_branch_forward.2} parent=35 // pred_check_branch
        %275 = sbr.rel (%p273) target = $region40
      $region39: #{pool_branch_forward.2} parent=35 // pred_region
        %p276 = scmp.lt.s32.totalorder %s14, 1
        %s277 = scalar_select %p276, %s14, 1
        %s278 = smul.addr %s277, 2
        %s279 = smul.addr %s278, 8
        %s280 = scalar_lea.vmem %s2, %s279
      $region40: #{pool_branch_forward.2} parent=35 // pred_fallthru
        _
    $region36: #{pool_branch_forward.2} parent=5 // pred_fallthru
      _
  $region6: #{pool_branch_forward.2} parent=0 // loop_footer
    %s12 = sadd.s32 1, %s8
  $region7: #{pool_branch_forward.2} parent=0 // loop_footer_branch
    %7 = sbr.rel target = $region3
  $region8: #{pool_branch_forward.2} parent=0 // loop_exit
    _

// kernel: pool_branch_forward.3
$region0: #{pool_branch_forward.3}
  #allocation0 [shape = 'u32[]', space=smem, size = 0x4, offset = 0x4, fixed_abs, tag = 'smem constant byte address 0x4 - core index']
  #allocation1 [shape = 'u32[144,128]{1,0:T(1,128)}', space=vmem, size = 0x12000, scoped, tag = 'internal scratch']
  %s0 = inlined_call_operand.vmem [shape: f32[16,2], index: 0, kind: input, shape index: {}]
  %s1 = inlined_call_operand.vmem [shape: f32[16,8], index: 1, kind: input, shape index: {}]
  %s2 = inlined_call_operand.vmem [shape: f32[2,8,256], index: 2, kind: input, shape index: {}]
  %s3 = inlined_call_operand.vmem [shape: f32[2,16,256], index: 3, kind: output, shape index: {}]
  %s4 = sld [smem:[#allocation0]]
  $region45: #{pool_branch_forward.3} parent=0
    _
  %s6 = ssub.s32 1, %s4
  %s7 = scalar_select 0, %s6, %s4
  loop: start=0, step=1, limit=4
  $region2: #{pool_branch_forward.3} parent=0 // loop_pre_header
    _
  $region3: #{pool_branch_forward.3} parent=0 // loop_header
    %s9 = sphi 0, %s13
    %p10 = scmp.ge.s32.totalorder %s9, 4
    %s17 = sphi 0, %s17
    %s19 = sphi 0, %s17
    %s20 = sphi 0, %s19
    %s34 = sphi 0, %s20
    %s38 = sphi 0, %s38
    %s40 = sphi 0, %s38
    %s41 = sphi 0, %s40
    %s55 = sphi 0, %s41
    %s61 = sphi 0, %s63
    %s64 = sphi 0, %s61
    %s65 = sphi 0, %s64
    %s81 = sphi 0, %s65
    %s87 = sphi 0, %s89
    %s90 = sphi 0, %s87
    %s91 = sphi 0, %s90
    %s107 = sphi 0, %s91
  $region4: #{pool_branch_forward.3} parent=0 // loop_header_branch
    %12 = sbr.rel (%p10) target = $region8
  $region5: #{pool_branch_forward.3} parent=0 // loop_body
    %s14 = ssub.s32 %s9, 1
    %s15 = ssub.s32 %s9, 2
    %s16 = sadd.s32 %s9, 1
    %s18 = sadd.s32 %s17, 1
    %p21 = scmp.eq.s32.totalorder %s9, 1
    %p22 = scmp.ne.s32.totalorder %s17, %s19
    %p23 = scmp.eq.s32.totalorder %s9, 0
    %p24 = por %p22, %p23
    %p25 = scmp.ne.s32.totalorder %s17, %s19
    %p26 = scmp.eq.s32.totalorder %s14, 1
    %p27 = por %p25, %p26
    %p28 = scmp.ne.s32.totalorder %s19, %s20
    %p29 = scmp.eq.s32.totalorder %s14, 0
    %p30 = por %p28, %p29
    %p31 = scmp.ne.s32.totalorder %s19, %s20
    %p32 = scmp.eq.s32.totalorder %s15, 1
    %p33 = por %p31, %p32
    %p35 = scmp.ne.s32.totalorder %s20, %s34
    %p36 = scmp.eq.s32.totalorder %s15, 0
    %p37 = por %p35, %p36
    %s39 = sadd.s32 %s38, 1
    %p42 = scmp.eq.s32.totalorder %s9, 1
    %p43 = scmp.ne.s32.totalorder %s38, %s40
    %p44 = scmp.eq.s32.totalorder %s9, 0
    %p45 = por %p43, %p44
    %p46 = scmp.ne.s32.totalorder %s38, %s40
    %p47 = scmp.eq.s32.totalorder %s14, 1
    %p48 = por %p46, %p47
    %p49 = scmp.ne.s32.totalorder %s40, %s41
    %p50 = scmp.eq.s32.totalorder %s14, 0
    %p51 = por %p49, %p50
    %p52 = scmp.ne.s32.totalorder %s40, %s41
    %p53 = scmp.eq.s32.totalorder %s15, 1
    %p54 = por %p52, %p53
    %p56 = scmp.ne.s32.totalorder %s41, %s55
    %p57 = scmp.eq.s32.totalorder %s15, 0
    %p58 = por %p56, %p57
    %s59 = ssub.s32 %s9, %s16
    %p60 = scmp.eq.s32.totalorder %s59, 0
    %s62 = sadd.s32 %s61, 1
    %s63 = scalar_select %p60, %s61, %s62
    %p66 = pneg %p60
    %p67 = scmp.eq.s32.totalorder %s9, 1
    %p68 = por %p66, %p67
    %p69 = scmp.ne.s32.totalorder %s61, %s64
    %p70 = scmp.eq.s32.totalorder %s9, 0
    %p71 = por %p69, %p70
    %p72 = scmp.ne.s32.totalorder %s61, %s64
    %p73 = scmp.eq.s32.totalorder %s14, 1
    %p74 = por %p72, %p73
    %p75 = scmp.ne.s32.totalorder %s64, %s65
    %p76 = scmp.eq.s32.totalorder %s14, 0
    %p77 = por %p75, %p76
    %p78 = scmp.ne.s32.totalorder %s64, %s65
    %p79 = scmp.eq.s32.totalorder %s15, 1
    %p80 = por %p78, %p79
    %p82 = scmp.ne.s32.totalorder %s65, %s81
    %p83 = scmp.eq.s32.totalorder %s15, 0
    %p84 = por %p82, %p83
    %s85 = ssub.s32 %s9, %s16
    %p86 = scmp.eq.s32.totalorder %s85, 0
    %s88 = sadd.s32 %s87, 1
    %s89 = scalar_select %p86, %s87, %s88
    %p92 = pneg %p86
    %p93 = scmp.eq.s32.totalorder %s9, 1
    %p94 = por %p92, %p93
    %p95 = scmp.ne.s32.totalorder %s87, %s90
    %p96 = scmp.eq.s32.totalorder %s9, 0
    %p97 = por %p95, %p96
    %p98 = scmp.ne.s32.totalorder %s87, %s90
    %p99 = scmp.eq.s32.totalorder %s14, 1
    %p100 = por %p98, %p99
    %p101 = scmp.ne.s32.totalorder %s90, %s91
    %p102 = scmp.eq.s32.totalorder %s14, 0
    %p103 = por %p101, %p102
    %p104 = scmp.ne.s32.totalorder %s90, %s91
    %p105 = scmp.eq.s32.totalorder %s15, 1
    %p106 = por %p104, %p105
    %p108 = scmp.ne.s32.totalorder %s91, %s107
    %p109 = scmp.eq.s32.totalorder %s15, 0
    %p110 = por %p108, %p109
    %p111 = scmp.le.s32.totalorder 1, %s9
    %p112 = scmp.lt.s32.totalorder %s9, 3
    %p113 = pnand %p111, %p112
    %p114 = pneg %p113
    // Predicated region
    $region9: #{pool_branch_forward.3} parent=5 // pred_check
      _
    $region10: #{pool_branch_forward.3} parent=5 // pred_check_branch
      %116 = sbr.rel (%p113) target = $region12
    $region11: #{pool_branch_forward.3} parent=5 // pred_region
      %s117 = ssub.s32 %s9, 1
      // Predicated region
      $region13: #{pool_branch_forward.3} parent=11 // pred_check
        %p118 = pneg %p30
      $region14: #{pool_branch_forward.3} parent=11 // pred_check_branch
        %120 = sbr.rel (%p118) target = $region16
      $region15: #{pool_branch_forward.3} parent=11 // pred_region
        _
      $region16: #{pool_branch_forward.3} parent=11 // pred_fallthru
        _
      // Predicated region
      $region17: #{pool_branch_forward.3} parent=11 // pred_check
        %p121 = pneg %p51
      $region18: #{pool_branch_forward.3} parent=11 // pred_check_branch
        %123 = sbr.rel (%p121) target = $region20
      $region19: #{pool_branch_forward.3} parent=11 // pred_region
        _
      $region20: #{pool_branch_forward.3} parent=11 // pred_fallthru
        _
    $region12: #{pool_branch_forward.3} parent=5 // pred_fallthru
      _
    %p124 = scmp.lt.s32.totalorder %s9, 2
    // Predicated region
    $region21: #{pool_branch_forward.3} parent=5 // pred_check
      %p125 = pneg %p124
    $region22: #{pool_branch_forward.3} parent=5 // pred_check_branch
      %127 = sbr.rel (%p125) target = $region24
    $region23: #{pool_branch_forward.3} parent=5 // pred_region
      // Predicated region
      $region25: #{pool_branch_forward.3} parent=23 // pred_check
        %p128 = pneg %p71
      $region26: #{pool_branch_forward.3} parent=23 // pred_check_branch
        %130 = sbr.rel (%p128) target = $region28
      $region27: #{pool_branch_forward.3} parent=23 // pred_region
        %p131 = scmp.lt.s32.totalorder %s9, 1
        %s132 = scalar_select %p131, %s9, 1
        %s133 = smul.addr %s132, 2
        %s134 = smul.addr %s133, 8
        %s135 = scalar_lea.vmem %s2, %s134
      $region28: #{pool_branch_forward.3} parent=23 // pred_fallthru
        _
    $region24: #{pool_branch_forward.3} parent=5 // pred_fallthru
      _
    %p136 = scmp.le.s32.totalorder 1, %s9
    %p137 = scmp.lt.s32.totalorder %s9, 3
    %p138 = pnand %p136, %p137
    %p139 = pneg %p138
    // Predicated region
    $region29: #{pool_branch_forward.3} parent=5 // pred_check
      _
    $region30: #{pool_branch_forward.3} parent=5 // pred_check_branch
      %141 = sbr.rel (%p138) target = $region32
    $region31: #{pool_branch_forward.3} parent=5 // pred_region
      %s142 = ssub.s32 %s9, 1
      %p143 = pneg %p30
      %p144 = pneg %p27
      %p145 = pneg %p51
      %p146 = pneg %p48
      %p147 = scmp.lt.s32.totalorder %s14, 1
      %s148 = scalar_select %p147, %s14, 1
      %s149 = smul.addr %s148, 2
      %s150 = smul.addr %s149, 8
      %s151 = scalar_lea.vmem %s2, %s150
      %p152 = pneg %p77
      %p153 = pneg %p74
      %p154 = pneg %p103
      %p155 = pneg %p100
      %p156 = scmp.lt.s32.totalorder %s14, 1
      %s157 = scalar_select %p156, %s14, 1
      %s158 = smul.addr %s157, 4
      %s159 = smul.addr %s158, 8
      %s160 = scalar_lea.vmem %s3, %s159
      %p161 = scmp.lt.s32.totalorder %s14, 1
      %s162 = scalar_select %p161, %s14, 1
      %s163 = smul.addr %s162, 2
      %s164 = smul.addr %s163, 8
      %s165 = scalar_lea.vmem %s2, %s164
      %p166 = scmp.lt.s32.totalorder %s14, 1
      %s167 = scalar_select %p166, %s14, 1
      %s168 = smul.addr %s167, 4
      %s169 = smul.addr %s168, 8
      %s170 = scalar_lea.vmem %s3, %s169
      %v171 = vld [vmem:[%s1] sm:$0xff]
      %v172 = vld [vmem:[%s1 + $0x8] sm:$0xff]
      %v173 = vld [vmem:[%s165] sm:$0xff]
      %v174 = vld [vmem:[%s165 + $0x8] sm:$0xff]
      %vm175 = vcmask 64512
      %v177 = vsel %vm175, %v171, 0
      %v180 = vsel %vm175, %v172, 0
      %182 = vmatprep.subr.mxu0 %v174
      %183 = vmatpush1.msra.mxu0 %v173
      %184 = vmatprep.subr.mxu0 0.0
      %185 = vmatpush1.msra.mxu0 0.0
      %186 = vmatprep.subr.mxu0 0.0
      %187 = vmatpush1.msra.mxu0 0.0
      %188 = vmatprep.subr.mxu0 0.0
      %189 = vmatpush1.msra.mxu0 0.0
      %190 = vmatprep.subr.mxu0 0.0
      %191 = vmatpush1.msra.mxu0 0.0
      %192 = vmatprep.subr.mxu0 0.0
      %193 = vmatpush1.msra.mxu0 0.0
      %194 = vmatprep.subr.mxu0 0.0
      %195 = vmatpush1.msra.mxu0 0.0
      %196 = vmatprep.subr.mxu0 0.0
      %197 = vmatpush1.msra.mxu0 0.0
      %198 = vmatprep.subr.mxu0 0.0
      %199 = vmatpush1.msra.mxu0 0.0
      %200 = vmatprep.subr.mxu0 0.0
      %201 = vmatpush1.msra.mxu0 0.0
      %202 = vmatprep.subr.mxu0 0.0
      %203 = vmatpush1.msra.mxu0 0.0
      %204 = vmatprep.subr.mxu0 0.0
      %205 = vmatpush1.msra.mxu0 0.0
      %206 = vmatprep.subr.mxu0 0.0
      %207 = vmatpush1.msra.mxu0 0.0
      %208 = vmatprep.subr.mxu0 0.0
      %209 = vmatpush1.msra.mxu0 0.0
      %210 = vmatprep.subr.mxu0 0.0
      %211 = vmatpush1.msra.mxu0 0.0
      %212 = vmatprep.subr.mxu0 0.0
      %213 = vmatpush1.msra.mxu0 0.0
      %214 = vmatprep.subr.mxu0 0.0
      %215 = vmatpush1.msra.mxu0 0.0
      %216 = vmatprep.subr.mxu0 0.0
      %217 = vmatpush1.msra.mxu0 0.0
      %218 = vmatprep.subr.mxu0 0.0
      %219 = vmatpush1.msra.mxu0 0.0
      %220 = vmatprep.subr.mxu0 0.0
      %221 = vmatpush1.msra.mxu0 0.0
      %222 = vmatprep.subr.mxu0 0.0
      %223 = vmatpush1.msra.mxu0 0.0
      %224 = vmatprep.subr.mxu0 0.0
      %225 = vmatpush1.msra.mxu0 0.0
      %226 = vmatprep.subr.mxu0 0.0
      %227 = vmatpush1.msra.mxu0 0.0
      %228 = vmatprep.subr.mxu0 0.0
      %229 = vmatpush1.msra.mxu0 0.0
      %230 = vmatprep.subr.mxu0 0.0
      %231 = vmatpush1.msra.mxu0 0.0
      %232 = vmatprep.subr.mxu0 0.0
      %233 = vmatpush1.msra.mxu0 0.0
      %234 = vmatprep.subr.mxu0 0.0
      %235 = vmatpush1.msra.mxu0 0.0
      %236 = vmatprep.subr.mxu0 0.0
      %237 = vmatpush1.msra.mxu0 0.0
      %238 = vmatprep.subr.mxu0 0.0
      %239 = vmatpush1.msra.mxu0 0.0
      %240 = vmatprep.subr.mxu0 0.0
      %241 = vmatpush1.msra.mxu0 0.0
      %242 = vmatprep.subr.mxu0 0.0
      %243 = vmatpush1.msra.mxu0 0.0
      %244 = vmatprep.subr.mxu0 0.0
      %245 = vmatpush1.msra.mxu0 0.0
      %246 = vmatprep.mubr.f32.mxu0 0.0
      %247 = vmatmul.mubr.f32.gmra.mrb[0].mxu0 %v177
      %v248 = vpop.f32.mrb[0].mxu0
      %v249 = vadd.f32 0.0, %v248
      %v250 = vpop.f32.mrb[0].mxu0
      %v251 = vadd.f32 0.0, %v250
      %252 = vmatprep.mubr.f32.mxu0 0.0
      %253 = vmatmul.mubr.f32.gmra.mrb[0].mxu0 %v180
      %v254 = vpop.f32.mrb[0].mxu0
      %v255 = vadd.f32 0.0, %v254
      %v256 = vpop.f32.mrb[0].mxu0
      %v257 = vadd.f32 0.0, %v256
      %258 = vdwg.mxu0
      %v259 = vld [vmem:[%s0] sm:$0xff]
      %v260 = vld [vmem:[%s0 + $0x8] sm:$0xff]
      %262 = vset.pattern.permute.xlu0 0
      %263 = vperm.xlu0 %262, %v259
      %v264 = vpop.permute.xlu0 %263
      %267 = vset.pattern.permute.xlu0 0
      %268 = vperm.xlu0 %267, %v260
      %v269 = vpop.permute.xlu0 %268
      %v271 = vsub.f32 %v249, %v264
      %v272 = vsub.f32 %v251, %v264
      %v273 = vsub.f32 %v255, %v269
      %v274 = vsub.f32 %v257, %v269
      %275 = vset.pattern.permute.xlu0 1
      %276 = vperm.xlu0 %275, %v259
      %v277 = vpop.permute.xlu0 %276
      %279 = vset.pattern.permute.xlu0 1
      %280 = vperm.xlu0 %279, %v260
      %v281 = vpop.permute.xlu0 %280
      %v283 = vmul.f32 %v271, %v277
      %v284 = vmul.f32 %v272, %v277
      %v285 = vmul.f32 %v273, %v281
      %v286 = vmul.f32 %v274, %v281
      %v287 = vmax.f32 %v283, 0.0
      %v288 = vmax.f32 %v284, 0.0
      %v289 = vmax.f32 %v285, 0.0
      %v290 = vmax.f32 %v286, 0.0
      %v291 = vlaneseq
      %v292 = vand.u32 %v291, 127
      %v293 = vadd.s32 %v292, 128
      %vm294 = vcmp.lt.s32.totalorder %v292, 0
      %v295 = vsub.s32 0, %v292
      %v296 = vsel %vm294, %v295, %v292
      %v297 = vshrl.u32 %v296, 4
      %v298 = vand.u32 %v296, 15
      %v299 = vsub.s32 0, %v298
      %v300 = vsel %vm294, %v299, %v298
      %vm301 = vcmp.lt.s32.totalorder %v293, 0
      %v302 = vsub.s32 0, %v293
      %v303 = vsel %vm301, %v302, %v293
      %v304 = vshrl.u32 %v303, 4
      %v305 = vand.u32 %v303, 15
      %v306 = vsub.s32 0, %v305
      %v307 = vsel %vm301, %v306, %v305
      %vm308 = vcmp.ne.s32.totalorder %v300, 0
      %vm309 = vcmp.ne.s32.totalorder %v307, 0
      %vm310 = vcmp.lt.s32.totalorder %v300, 0
      %vm311 = vcmp.lt.s32.totalorder %v307, 0
      %vm312 = vmand %vm310, %vm308
      %vm313 = vmand %vm311, %vm309
      %v314 = vadd.s32 %v300, 16
      %v315 = vadd.s32 %v307, 16
      %v316 = vsel %vm312, %v314, %v300
      %v317 = vsel %vm313, %v315, %v307
      %vm318 = vcmp.ge.s32.totalorder %v292, 16
      %vm319 = vcmp.ge.s32.totalorder %v293, 16
      %320 = vrot.lane.b32.xlu0 %v287, 16
      %v321 = vpop.permute.xlu0 %320
      %322 = vrot.lane.b32.xlu0 %v289, 16
      %v323 = vpop.permute.xlu0 %322
      %324 = vrot.lane.b32.xlu0 %v288, 16
      %v325 = vpop.permute.xlu0 %324
      %326 = vrot.lane.b32.xlu0 %v290, 16
      %v327 = vpop.permute.xlu0 %326
      %vm328 = vcmp.lt.s32.totalorder %v292, 16
      %v329 = vsel %vm328, %v321, %v325
      %v330 = vsel %vm328, %v323, %v327
      %v331 = vsel %vm328, %v325, %v321
      %v332 = vsel %vm328, %v327, %v323
      %v333 = vsel %vm318, %v331, 0.0
      %v334 = vsel %vm319, %v329, 0.0
      %v335 = vsel %vm318, %v332, 0.0
      %v336 = vsel %vm319, %v330, 0.0
      %vm337 = vcmp.lt.s32.totalorder %v292, 240
      %vm338 = vcmp.lt.s32.totalorder %v293, 240
      %339 = vrot.lane.b32.xlu0 %v287, 112
      %v340 = vpop.permute.xlu0 %339
      %341 = vrot.lane.b32.xlu0 %v289, 112
      %v342 = vpop.permute.xlu0 %341
      %343 = vrot.lane.b32.xlu0 %v288, 112
      %v344 = vpop.permute.xlu0 %343
      %345 = vrot.lane.b32.xlu0 %v290, 112
      %v346 = vpop.permute.xlu0 %345
      %vm347 = vcmp.lt.s32.totalorder %v292, 112
      %v348 = vsel %vm347, %v340, %v344
      %v349 = vsel %vm347, %v342, %v346
      %v350 = vsel %vm347, %v344, %v340
      %v351 = vsel %vm347, %v346, %v342
      %v352 = vsel %vm337, %v348, 0.0
      %v353 = vsel %vm338, %v350, 0.0
      %v354 = vsel %vm337, %v349, 0.0
      %v355 = vsel %vm338, %v351, 0.0
      %v356 = vadd.f32 %v333, %v287
      %v357 = vadd.f32 %v334, %v288
      %v358 = vadd.f32 %v335, %v289
      %v359 = vadd.f32 %v336, %v290
      %v360 = vadd.f32 %v356, %v352
      %v361 = vadd.f32 %v357, %v353
      %v362 = vadd.f32 %v358, %v354
      %v363 = vadd.f32 %v359, %v355
      %vm364 = vcmp.ge.s32.totalorder %v316, 1
      %vm365 = vcmp.ge.s32.totalorder %v317, 1
      %366 = vrot.lane.b32.xlu0 %v360, 1
      %v367 = vpop.permute.xlu0 %366
      %368 = vrot.lane.b32.xlu0 %v362, 1
      %v369 = vpop.permute.xlu0 %368
      %370 = vrot.lane.b32.xlu0 %v361, 1
      %v371 = vpop.permute.xlu0 %370
      %372 = vrot.lane.b32.xlu0 %v363, 1
      %v373 = vpop.permute.xlu0 %372
      %vm374 = vcmp.lt.s32.totalorder %v292, 1
      %v375 = vsel %vm374, %v367, %v371
      %v376 = vsel %vm374, %v369, %v373
      %v377 = vsel %vm374, %v371, %v367
      %v378 = vsel %vm374, %v373, %v369
      %v379 = vsel %vm364, %v377, 0.0
      %v380 = vsel %vm365, %v375, 0.0
      %v381 = vsel %vm364, %v378, 0.0
      %v382 = vsel %vm365, %v376, 0.0
      %vm383 = vcmp.le.s32.totalorder %v316, 14
      %vm384 = vcmp.le.s32.totalorder %v317, 14
      %385 = vrot.lane.b32.xlu0 %v360, 127
      %v386 = vpop.permute.xlu0 %385
      %387 = vrot.lane.b32.xlu0 %v362, 127
      %v388 = vpop.permute.xlu0 %387
      %389 = vrot.lane.b32.xlu0 %v361, 127
      %v390 = vpop.permute.xlu0 %389
      %391 = vrot.lane.b32.xlu0 %v363, 127
      %v392 = vpop.permute.xlu0 %391
      %vm393 = vcmp.lt.s32.totalorder %v292, 127
      %v394 = vsel %vm393, %v386, %v390
      %v395 = vsel %vm393, %v388, %v392
      %v396 = vsel %vm393, %v390, %v386
      %v397 = vsel %vm393, %v392, %v388
      %v398 = vsel %vm383, %v394, 0.0
      %v399 = vsel %vm384, %v396, 0.0
      %v400 = vsel %vm383, %v395, 0.0
      %v401 = vsel %vm384, %v397, 0.0
      %v402 = vadd.f32 %v379, %v360
      %v403 = vadd.f32 %v380, %v361
      %v404 = vadd.f32 %v381, %v362
      %v405 = vadd.f32 %v382, %v363
      %v406 = vadd.f32 %v402, %v398
      %v407 = vadd.f32 %v403, %v399
      %v408 = vadd.f32 %v404, %v400
      %v409 = vadd.f32 %v405, %v401
      %v410 = vmul.f32 %v406, 0.11111111
      %v411 = vmul.f32 %v407, 0.11111111
      %v412 = vmul.f32 %v408, 0.11111111
      %v413 = vmul.f32 %v409, 0.11111111
      %414 = vst [vmem:[%s170] sm:$0xff] %v410
      %415 = vst [vmem:[%s170 + $0x8] sm:$0xff] %v411
      %416 = vst [vmem:[%s170 + $0x10] sm:$0xff] %v412
      %417 = vst [vmem:[%s170 + $0x18] sm:$0xff] %v413
      %p418 = scmp.lt.s32.totalorder %s14, 1
      %s419 = scalar_select %p418, %s14, 1
      %s420 = smul.addr %s419, 4
      %s421 = smul.addr %s420, 8
      %s422 = scalar_lea.vmem %s3, %s421
      // Predicated region
      $region33: #{pool_branch_forward.3} parent=31 // pred_check
        %p423 = pneg %p100
      $region34: #{pool_branch_forward.3} parent=31 // pred_check_branch
        %425 = sbr.rel (%p423) target = $region36
      $region35: #{pool_branch_forward.3} parent=31 // pred_region
        _
      $region36: #{pool_branch_forward.3} parent=31 // pred_fallthru
        _
    $region32: #{pool_branch_forward.3} parent=5 // pred_fallthru
      _
    %p426 = scmp.le.s32.totalorder 2, %s9
    // Predicated region
    $region37: #{pool_branch_forward.3} parent=5 // pred_check
      %p427 = pneg %p426
    $region38: #{pool_branch_forward.3} parent=5 // pred_check_branch
      %429 = sbr.rel (%p427) target = $region40
    $region39: #{pool_branch_forward.3} parent=5 // pred_region
      %s430 = ssub.s32 %s9, 2
      // Predicated region
      $region41: #{pool_branch_forward.3} parent=39 // pred_check
        %p431 = pneg %p106
      $region42: #{pool_branch_forward.3} parent=39 // pred_check_branch
        %433 = sbr.rel (%p431) target = $region44
      $region43: #{pool_branch_forward.3} parent=39 // pred_region
        %p434 = scmp.lt.s32.totalorder %s15, 1
        %s435 = scalar_select %p434, %s15, 1
        %s436 = smul.addr %s435, 4
        %s437 = smul.addr %s436, 8
        %s438 = scalar_lea.vmem %s3, %s437
      $region44: #{pool_branch_forward.3} parent=39 // pred_fallthru
        _
    $region40: #{pool_branch_forward.3} parent=5 // pred_fallthru
      _
  $region6: #{pool_branch_forward.3} parent=0 // loop_footer
    %s13 = sadd.s32 1, %s9
  $region7: #{pool_branch_forward.3} parent=0 // loop_footer_branch
    %8 = sbr.rel target = $region3
  $region8: #{pool_branch_forward.3} parent=0 // loop_exit
    _

</llo_original>
